<compile_context>
chip_gen: v7x
topology: tpu7x:2x2x1
jax: 0.10.0
libtpu: 0.0.40
codegen_flags: <defaults>
</compile_context>

<pallas_src>
import functools

import jax
import jax.numpy as jnp
from jax.experimental import pallas as pl
from jax.experimental.pallas import tpu as pltpu


def _round_up(x, m):
    return (x + m - 1) // m * m


# --------------------------------------------------------------------------
# Kernel 1: projection  XWcat[j] = X @ W_all[j]   (j = 0 is the self-loop W)
# --------------------------------------------------------------------------
def _proj_kernel(x_ref, w_ref, o_ref):
    o_ref[...] = jnp.dot(
        x_ref[...], w_ref[...], preferred_element_type=jnp.float32
    ).astype(o_ref.dtype)


def _project(x_p, w_all, *, tm):
    """x_p: (N_p, Din_p) f32; w_all: (R+1, Din_p, Dout_p) f32 -> (R+1, N_p, Dout_p) bf16."""
    n_p, d_in_p = x_p.shape
    n_w, _, d_out_p = w_all.shape
    grid = (pl.cdiv(n_p, tm), n_w)

    flops = 2 * n_w * n_p * d_in_p * d_out_p
    bytes_accessed = int(
        n_w * n_p * d_in_p * 4 + n_w * d_in_p * d_out_p * 4 + n_w * n_p * d_out_p * 2
    )

    return pl.pallas_call(
        _proj_kernel,
        out_shape=jax.ShapeDtypeStruct((n_w, n_p, d_out_p), jnp.bfloat16),
        grid_spec=pltpu.PrefetchScalarGridSpec(
            num_scalar_prefetch=0,
            grid=grid,
            in_specs=[
                pl.BlockSpec((tm, d_in_p), lambda i, j: (i, 0)),          # X row tile
                pl.BlockSpec((None, d_in_p, d_out_p), lambda i, j: (j, 0, 0)),  # W_j
            ],
            out_specs=pl.BlockSpec((None, tm, d_out_p), lambda i, j: (j, i, 0)),
        ),
        compiler_params=pltpu.CompilerParams(
            dimension_semantics=("parallel", "parallel"),
            vmem_limit_bytes=64 * 1024 * 1024,
        ),
        cost_estimate=pl.CostEstimate(
            flops=flops, transcendentals=0, bytes_accessed=bytes_accessed
        ),
    )(x_p, w_all)


# --------------------------------------------------------------------------
# Kernel 2: aggregation  out = act( XW_self + sum_r A_r @ XW_r )
# --------------------------------------------------------------------------
def _agg_kernel(s_ref, xw_ref, a_ref, o_ref, acc_ref, *, apply_relu):
    r = pl.program_id(1)

    # Initialize the accumulator with the self-loop term on the first relation.
    @pl.when(r == 0)
    def _():
        acc_ref[...] = s_ref[...].astype(jnp.float32)

    # Per-relation message passing on a row tile:  A_r[rows] @ (X @ W_r)
    acc_ref[...] += jnp.dot(
        a_ref[...], xw_ref[...], preferred_element_type=jnp.float32
    )

    # Finalize: activation + cast on the last relation.
    @pl.when(r == pl.num_programs(1) - 1)
    def _():
        res = acc_ref[...]
        if apply_relu:
            res = jnp.maximum(res, 0.0)
        o_ref[...] = res.astype(o_ref.dtype)


def _aggregate(xw_cat, adj_bf16, *, tm, apply_relu, out_dtype):
    """xw_cat: (R+1, N_p, Dout_p) bf16 (block 0 = self term); adj_bf16: (R, N_p, N_p)."""
    n_w, n_p, d_out_p = xw_cat.shape
    n_rel = n_w - 1
    assert n_rel >= 1, "EntityRGCN requires at least one relation"
    assert adj_bf16.shape == (n_rel, n_p, n_p)

    n_row_tiles = pl.cdiv(n_p, tm)
    grid = (n_row_tiles, n_rel)
    kernel = functools.partial(_agg_kernel, apply_relu=apply_relu)

    flops = 2 * n_rel * n_p * n_p * d_out_p
    bytes_accessed = int(
        n_rel * n_p * n_p * 2                       # adjacency (bf16), streamed once
        + n_row_tiles * n_rel * n_p * d_out_p * 2   # relation slabs, re-streamed per row tile
        + n_p * d_out_p * 2                         # self-loop term
        + n_p * d_out_p * jnp.dtype(out_dtype).itemsize
    )

    return pl.pallas_call(
        kernel,
        out_shape=jax.ShapeDtypeStruct((n_p, d_out_p), out_dtype),
        grid_spec=pltpu.PrefetchScalarGridSpec(
            num_scalar_prefetch=0,
            grid=grid,
            in_specs=[
                # self-loop term (row tile, constant across relations)
                pl.BlockSpec((None, tm, d_out_p), lambda i, r: (0, i, 0)),
                # projected features of relation r (full node slab)
                pl.BlockSpec((None, n_p, d_out_p), lambda i, r: (r + 1, 0, 0)),
                # row tile of relation-r adjacency
                pl.BlockSpec((None, tm, n_p), lambda i, r: (r, i, 0)),
            ],
            out_specs=pl.BlockSpec((tm, d_out_p), lambda i, r: (i, 0)),
            scratch_shapes=[pltpu.VMEM((tm, d_out_p), jnp.float32)],
        ),
        compiler_params=pltpu.CompilerParams(
            # row tiles are independent (megacore-parallel on v7x);
            # relations form the reduction axis (accumulator in VMEM scratch).
            dimension_semantics=("parallel", "arbitrary"),
            vmem_limit_bytes=64 * 1024 * 1024,
        ),
        cost_estimate=pl.CostEstimate(
            flops=flops, transcendentals=0, bytes_accessed=bytes_accessed
        ),
    )(xw_cat, xw_cat, adj_bf16)


def rgcn_layer(x_p, w_all, adj_bf16, *, apply_relu, tm):
    """One RGCN layer on padded operands:  act(sum_r A_r @ X @ W_r + X @ W_self)."""
    xw_cat = _project(x_p, w_all, tm=tm)
    return _aggregate(
        xw_cat, adj_bf16, tm=tm, apply_relu=apply_relu, out_dtype=x_p.dtype
    )


class EntityRGCNPallas:
    """JAX/Pallas equivalent of EntityRGCN: a stack of RGCN layers (forward only)."""

    def __init__(self, dims, adjacency, key, *, row_tile=256):
        n_rel, n_nodes, _ = adjacency.shape
        assert n_rel >= 1
        self.n_nodes = n_nodes
        self.dims = list(dims)
        self.dims_p = [_round_up(d, 128) for d in dims]

        # Node dim padded to the sublane granule; pick the row tile once.
        self.n_p = _round_up(n_nodes, 8)
        self.row_tile = min(row_tile, self.n_p)

        # Pad + cast adjacency to bf16 once: it is the dominant streamed operand.
        adj = jnp.zeros((n_rel, self.n_p, self.n_p), jnp.float32)
        adj = adj.at[:, :n_nodes, :n_nodes].set(adjacency.astype(jnp.float32))
        self.adjacency = adj.astype(jnp.bfloat16)

        self.params = []   # un-padded (w_rel, w_self) for reference checking
        self.w_all = []    # padded (R+1, Din_p, Dout_p) f32, block 0 = self-loop
        n_layers = len(dims) - 1
        for i in range(n_layers):
            key, k_rel, k_self = jax.random.split(key, 3)
            d_in, d_out = dims[i], dims[i + 1]
            scale = 1.0 / jnp.sqrt(jnp.float32(d_in))
            w_rel = jax.random.normal(k_rel, (n_rel, d_in, d_out), jnp.float32) * scale
            w_self = jax.random.normal(k_self, (d_in, d_out), jnp.float32) * scale
            self.params.append((w_rel, w_self))

            d_in_p, d_out_p = self.dims_p[i], self.dims_p[i + 1]
            w_all = jnp.zeros((n_rel + 1, d_in_p, d_out_p), jnp.float32)
            w_all = w_all.at[0, :d_in, :d_out].set(w_self)
            w_all = w_all.at[1:, :d_in, :d_out].set(w_rel)
            self.w_all.append(w_all)

    def __call__(self, x):
        n_nodes, d0 = x.shape
        assert n_nodes == self.n_nodes and d0 == self.dims[0]

        # Pad nodes to a sublane multiple and features to a lane multiple once.
        h = jnp.zeros((self.n_p, self.dims_p[0]), jnp.float32)
        h = h.at[:n_nodes, :d0].set(x.astype(jnp.float32))

        n_layers = len(self.w_all)
        for i, w_all in enumerate(self.w_all):
            h = rgcn_layer(
                h,
                w_all,
                self.adjacency,
                apply_relu=(i < n_layers - 1),
                tm=self.row_tile,
            )
        # Strip padding: first n_nodes rows, first d_out columns are the logits.
        return h[:n_nodes, : self.dims[-1]]


def _reference_forward(x, params, adjacency):
    """Pure-JAX f32 reference for correctness checking."""
    h = x
    n_layers = len(params)
    for i, (w_rel, w_self) in enumerate(params):
        out = h @ w_self + jnp.einsum(
            "rnm,rmd->nd", adjacency, jnp.einsum("mk,rkd->rmd", h, w_rel)
        )
        if i < n_layers - 1:
            out = jnp.maximum(out, 0.0)
        h = out
    return h


if __name__ == "__main__":
    key = jax.random.PRNGKey(0)
    key, k_adj, k_x, k_model = jax.random.split(key, 4)

    # Small, deterministic problem: 16 nodes, 2 relations, dims [8, 32, 4].
    n_nodes = 16
    n_rel = 2
    dims = [8, 32, 4]

    # Random row-normalized adjacency per relation (with self loops).
    raw = jax.random.bernoulli(k_adj, 0.3, (n_rel, n_nodes, n_nodes)).astype(jnp.float32)
    raw = raw + jnp.eye(n_nodes, dtype=jnp.float32)[None]  # ensure nonzero rows
    adjacency = raw / jnp.sum(raw, axis=-1, keepdims=True)

    x = jax.random.normal(k_x, (n_nodes, dims[0]), jnp.float32)

    model = EntityRGCNPallas(dims, adjacency, k_model)
    out = model(x)
    out = jax.block_until_ready(out)

    # Sanity check against a pure-JAX f32 reference (kernel streams A / XW in
    # bf16 with f32 accumulation, so allow bf16-level tolerance).
    ref = _reference_forward(x, model.params, adjacency)
    assert out.shape == (n_nodes, dims[-1])
    assert jnp.allclose(out, ref, atol=5e-2, rtol=5e-2), (
        float(jnp.max(jnp.abs(out - ref)))
    )

    print("KERNEL_OK")
</pallas_src>

<mosaic_0001>
module attributes {stable_mosaic.version = 11 : i64} {
  func.func @_proj_kernel(%arg0: i32, %arg1: i32, %arg2: memref<16x128xf32, #tpu.memory_space<vmem>>, %arg3: memref<1x128x128xf32, #tpu.memory_space<vmem>>, %arg4: memref<1x16x128xbf16, #tpu.memory_space<vmem>>) attributes {dimension_semantics = [#tpu.dimension_semantics<parallel>, #tpu.dimension_semantics<parallel>], iteration_bounds = array<i64: 1, 3>, scalar_prefetch = 0 : i64, scratch_operands = 0 : i64, tpu.core_type = #tpu.core_type<tc>, window_params = [{transform_indices = @transform_0, window_bounds = array<i64: 16, 128>}, {transform_indices = @transform_1, window_bounds = array<i64: 1, 128, 128>}, {transform_indices = @transform_2, window_bounds = array<i64: 1, 16, 128>}]} {
    %c0 = arith.constant 0 : index
    %c0_0 = arith.constant 0 : index
    %0 = vector.load %arg2[%c0, %c0_0] : memref<16x128xf32, #tpu.memory_space<vmem>>, vector<16x128xf32>
    %c0_1 = arith.constant 0 : index
    %c0_2 = arith.constant 0 : index
    %c0_3 = arith.constant 0 : index
    %1 = vector.load %arg3[%c0_1, %c0_2, %c0_3] : memref<1x128x128xf32, #tpu.memory_space<vmem>>, vector<1x128x128xf32>
    %2 = vector.shape_cast %1 : vector<1x128x128xf32> to vector<128x128xf32>
    %cst = arith.constant dense<0.000000e+00> : vector<16x128xf32>
    %3 = tpu.matmul %0, %2, %cst {dimension_numbers = #tpu.dot_dimension_numbers<[1], [0], [0], [1], [0, 0, 1, 1], [], []>} : vector<16x128xf32>, vector<128x128xf32>, vector<16x128xf32> -> vector<16x128xf32>
    %4 = arith.truncf %3 : vector<16x128xf32> to vector<16x128xbf16>
    %c0_4 = arith.constant 0 : index
    %c0_5 = arith.constant 0 : index
    %c0_6 = arith.constant 0 : index
    %5 = vector.load %arg4[%c0_4, %c0_5, %c0_6] : memref<1x16x128xbf16, #tpu.memory_space<vmem>>, vector<1x16x128xbf16>
    %6 = vector.shape_cast %5 : vector<1x16x128xbf16> to vector<16x128xbf16>
    %7 = vector.shape_cast %4 : vector<16x128xbf16> to vector<1x16x128xbf16>
    tpu.vector_store %arg4[%c0_4, %c0_5, %c0_6], %7 {strides = array<i32>} : memref<1x16x128xbf16, #tpu.memory_space<vmem>>, vector<1x16x128xbf16>,
    return
  }
  func.func @transform_0(%arg0: i32, %arg1: i32) -> (i32, i32) {
    %c0_i32 = arith.constant 0 : i32
    %c0_i32_0 = arith.constant 0 : i32
    return %arg0, %c0_i32 : i32, i32
  }
  func.func @transform_1(%arg0: i32, %arg1: i32) -> (i32, i32, i32) {
    %c0_i32 = arith.constant 0 : i32
    %c0_i32_0 = arith.constant 0 : i32
    %c0_i32_1 = arith.constant 0 : i32
    return %arg1, %c0_i32, %c0_i32_0 : i32, i32, i32
  }
  func.func @transform_2(%arg0: i32, %arg1: i32) -> (i32, i32, i32) {
    %c0_i32 = arith.constant 0 : i32
    %c0_i32_0 = arith.constant 0 : i32
    return %arg1, %arg0, %c0_i32 : i32, i32, i32
  }
}

</mosaic_0001>

<llo_original>
// kernel: tpu_custom_call.1
$region0: #{tpu_custom_call.1}
  #allocation0 [shape = 'u32[]', space=smem, size = 0x4, offset = 0x4, fixed_abs, tag = 'smem constant byte address 0x4 - core index']
  #allocation1 [shape = 'u32[144,128]{1,0:T(1,128)}', space=vmem, size = 0x12000, scoped, tag = 'internal scratch']
  %s0 = inlined_call_operand.hbm [shape: f32[16,128], index: 0, kind: input, shape index: {}]
  %s1 = inlined_call_operand.hbm [shape: f32[3,128,128], index: 1, kind: input, shape index: {}]
  %s2 = inlined_call_operand.hbm [shape: bf16[3,16,128], index: 2, kind: output, shape index: {}]
  %s3 = sld [smem:[#allocation0]]
  $region49: #{tpu_custom_call.1} parent=0
    _
  %s5 = ssub.s32 1, %s3
  %s6 = scalar_select 0, %s5, %s3
  $region1: #{tpu_custom_call.1} parent=0
    #allocation2 [shape = 'u8[8192]{0}', space=vmem, size = 0x2000, scoped, tag = 'input window, operand 0, single buffered']
    #allocation3 [shape = 's32[2]{0}', space=sflag, size = 0x8, scoped, tag = 'scoped memory for tpu_custom_call.1']
    #allocation4 [shape = 's32[2]{0}', space=sflag, size = 0x8, scoped, tag = 'scoped memory for tpu_custom_call.1']
    #allocation5 [shape = 'u8[131072]{0}', space=vmem, size = 0x20000, scoped, tag = 'input window, operand 1']
    #allocation6 [shape = 's32[2]{0}', space=sflag, size = 0x8, scoped, tag = 'scoped memory for tpu_custom_call.1']
    #allocation7 [shape = 'u8[8192]{0}', space=vmem, size = 0x2000, scoped, tag = 'output window, operand 0']
    %7 = vsyncpa [#allocation3], 0
    %8 = vsyncpa [#allocation6], 0
    %s9 = scalar_lea.sflag [#allocation6], 1
    %10 = vsyncpa %s9, 0
    %11 = vsyncpa [#allocation4], 0
    %s12 = scalar_lea.sflag [#allocation4], 1
    %13 = vsyncpa %s12, 0
    loop: start=0, step=1, limit=5
    $region2: #{tpu_custom_call.1} parent=1 // loop_pre_header
      _
    $region3: #{tpu_custom_call.1} parent=1 // loop_header
      %s15 = sphi 0, %s19
      %p16 = scmp.ge.s32.totalorder %s15, 5
      %s22 = sphi 0, %s34
      %s23 = sphi 0, %s30
      %s24 = sphi 0, %s22
      %s25 = sphi 0, %s23
      %s26 = sphi 0, %s24
      %s27 = sphi 0, %s25
      %s37 = sphi 0, %s39
      %s40 = sphi 0, %s37
      %s41 = sphi 0, %s40
      %s57 = sphi 0, %s41
      %s63 = sphi 0, %s65
      %s66 = sphi 0, %s63
      %s67 = sphi 0, %s66
      %s83 = sphi 0, %s67
      %s91 = sphi 0, %s93
      %s94 = sphi 0, %s91
      %s95 = sphi 0, %s94
      %s111 = sphi 0, %s95
    $region4: #{tpu_custom_call.1} parent=1 // loop_header_branch
      %18 = sbr.rel (%p16) target = $region8
    $region5: #{tpu_custom_call.1} parent=1 // loop_body
      %s20 = ssub.s32 %s15, 1
      %s21 = ssub.s32 %s15, 2
      %s28 = sadd.s32 1, %s23
      %p29 = scmp.ge.s32.totalorder %s28, 3
      %s30 = scalar_select %p29, 0, %s28
      %s31 = sadd.s32 1, %s22
      %s32 = scalar_select %p29, %s31, %s22
      %p33 = scmp.ge.s32.totalorder %s32, 1
      %s34 = scalar_select %p33, 0, %s32
      %s35 = ssub.s32 %s22, %s34
      %p36 = scmp.eq.s32.totalorder %s35, 0
      %s38 = sadd.s32 %s37, 1
      %s39 = scalar_select %p36, %s37, %s38
      %p42 = pneg %p36
      %p43 = scmp.eq.s32.totalorder %s15, 2
      %p44 = por %p42, %p43
      %p45 = scmp.ne.s32.totalorder %s37, %s40
      %p46 = scmp.eq.s32.totalorder %s15, 0
      %p47 = por %p45, %p46
      %p48 = scmp.ne.s32.totalorder %s37, %s40
      %p49 = scmp.eq.s32.totalorder %s20, 2
      %p50 = por %p48, %p49
      %p51 = scmp.ne.s32.totalorder %s40, %s41
      %p52 = scmp.eq.s32.totalorder %s20, 0
      %p53 = por %p51, %p52
      %p54 = scmp.ne.s32.totalorder %s40, %s41
      %p55 = scmp.eq.s32.totalorder %s21, 2
      %p56 = por %p54, %p55
      %p58 = scmp.ne.s32.totalorder %s41, %s57
      %p59 = scmp.eq.s32.totalorder %s21, 0
      %p60 = por %p58, %p59
      %s61 = ssub.s32 %s23, %s30
      %p62 = scmp.eq.s32.totalorder %s61, 0
      %s64 = sadd.s32 %s63, 1
      %s65 = scalar_select %p62, %s63, %s64
      %p68 = pneg %p62
      %p69 = scmp.eq.s32.totalorder %s15, 2
      %p70 = por %p68, %p69
      %p71 = scmp.ne.s32.totalorder %s63, %s66
      %p72 = scmp.eq.s32.totalorder %s15, 0
      %p73 = por %p71, %p72
      %p74 = scmp.ne.s32.totalorder %s63, %s66
      %p75 = scmp.eq.s32.totalorder %s20, 2
      %p76 = por %p74, %p75
      %p77 = scmp.ne.s32.totalorder %s66, %s67
      %p78 = scmp.eq.s32.totalorder %s20, 0
      %p79 = por %p77, %p78
      %p80 = scmp.ne.s32.totalorder %s66, %s67
      %p81 = scmp.eq.s32.totalorder %s21, 2
      %p82 = por %p80, %p81
      %p84 = scmp.ne.s32.totalorder %s67, %s83
      %p85 = scmp.eq.s32.totalorder %s21, 0
      %p86 = por %p84, %p85
      %s87 = ssub.s32 %s23, %s30
      %s88 = ssub.s32 %s22, %s34
      %s89 = sor.u32 %s87, %s88
      %p90 = scmp.eq.s32.totalorder %s89, 0
      %s92 = sadd.s32 %s91, 1
      %s93 = scalar_select %p90, %s91, %s92
      %p96 = pneg %p90
      %p97 = scmp.eq.s32.totalorder %s15, 2
      %p98 = por %p96, %p97
      %p99 = scmp.ne.s32.totalorder %s91, %s94
      %p100 = scmp.eq.s32.totalorder %s15, 0
      %p101 = por %p99, %p100
      %p102 = scmp.ne.s32.totalorder %s91, %s94
      %p103 = scmp.eq.s32.totalorder %s20, 2
      %p104 = por %p102, %p103
      %p105 = scmp.ne.s32.totalorder %s94, %s95
      %p106 = scmp.eq.s32.totalorder %s20, 0
      %p107 = por %p105, %p106
      %p108 = scmp.ne.s32.totalorder %s94, %s95
      %p109 = scmp.eq.s32.totalorder %s21, 2
      %p110 = por %p108, %p109
      %p112 = scmp.ne.s32.totalorder %s95, %s111
      %p113 = scmp.eq.s32.totalorder %s21, 0
      %p114 = por %p112, %p113
      %p115 = scmp.le.s32.totalorder 1, %s15
      %p116 = scmp.lt.s32.totalorder %s15, 4
      %p117 = pnand %p115, %p116
      %p118 = pneg %p117
      // Predicated region
      $region9: #{tpu_custom_call.1} parent=5 // pred_check
        _
      $region10: #{tpu_custom_call.1} parent=5 // pred_check_branch
        %120 = sbr.rel (%p117) target = $region12
      $region11: #{tpu_custom_call.1} parent=5 // pred_region
        %s121 = ssub.s32 %s15, 1
        // Predicated region
        $region13: #{tpu_custom_call.1} parent=11 // pred_check
          %p122 = pneg %p53
        $region14: #{tpu_custom_call.1} parent=11 // pred_check_branch
          %124 = sbr.rel (%p122) target = $region16
        $region15: #{tpu_custom_call.1} parent=11 // pred_region
          %s125 = smul.u32 2, %s24
          %s127 = ssub.s32 256, 256
          %128 = vsyncadd [#allocation3], %s127
          %s129 = smul.addr %s125, 128
          %s130 = scalar_lea.hbm %s0, %s129
          %s131 = sshll.u32 [#allocation2], 4
          %s132 = int_to_ptr.vmem [resolvable:$true] %s131
          %137 = dma.hbm_to_vmem [thread:$0]  %s130, 256, %s132, [#allocation3], 128, 128, 8
        $region16: #{tpu_custom_call.1} parent=11 // pred_fallthru
          _
      $region12: #{tpu_custom_call.1} parent=5 // pred_fallthru
        _
      %p138 = scmp.lt.s32.totalorder %s15, 3
      // Predicated region
      $region17: #{tpu_custom_call.1} parent=5 // pred_check
        %p139 = pneg %p138
      $region18: #{tpu_custom_call.1} parent=5 // pred_check_branch
        %141 = sbr.rel (%p139) target = $region20
      $region19: #{tpu_custom_call.1} parent=5 // pred_region
        // Predicated region
        $region21: #{tpu_custom_call.1} parent=19 // pred_check
          %p142 = pneg %p73
        $region22: #{tpu_custom_call.1} parent=19 // pred_check_branch
          %144 = sbr.rel (%p142) target = $region24
        $region23: #{tpu_custom_call.1} parent=19 // pred_region
          %s145 = sand.u32 %s63, 1
          %s146 = scalar_lea.sflag [#allocation6], %s145
          %s147 = sand.u32 %s63, 1
          %s148 = smul.addr %s147, 128
          %s149 = scalar_lea.vmem [#allocation5], %s148
          %s151 = ssub.s32 2048, 2048
          %152 = vsyncadd %s146, %s151
          %s153 = smul.addr %s23, 16
          %s154 = smul.addr %s153, 128
          %s155 = scalar_lea.hbm %s1, %s154
          %s156 = sshll.u32 %s149, 4
          %s157 = int_to_ptr.vmem [resolvable:$true] %s156
          %162 = dma.hbm_to_vmem [thread:$0]  %s155, 2048, %s157, %s146, 128, 128, 8
        $region24: #{tpu_custom_call.1} parent=19 // pred_fallthru
          _
      $region20: #{tpu_custom_call.1} parent=5 // pred_fallthru
        _
      %p163 = scmp.le.s32.totalorder 1, %s15
      %p164 = scmp.lt.s32.totalorder %s15, 4
      %p165 = pnand %p163, %p164
      %p166 = pneg %p165
      // Predicated region
      $region25: #{tpu_custom_call.1} parent=5 // pred_check
        _
      $region26: #{tpu_custom_call.1} parent=5 // pred_check_branch
        %168 = sbr.rel (%p165) target = $region28
      $region27: #{tpu_custom_call.1} parent=5 // pred_region
        %s169 = ssub.s32 %s15, 1
        // Predicated region
        $region29: #{tpu_custom_call.1} parent=27 // pred_check
          %p170 = pneg %p53
        $region30: #{tpu_custom_call.1} parent=27 // pred_check_branch
          %172 = sbr.rel (%p170) target = $region32
        $region31: #{tpu_custom_call.1} parent=27 // pred_region
          %173 = dma.done [#allocation3], 256
        $region32: #{tpu_custom_call.1} parent=27 // pred_fallthru
          _
        %s174 = sand.u32 %s66, 1
        %s175 = scalar_lea.sflag [#allocation6], %s174
        %s176 = sand.u32 %s66, 1
        %s177 = smul.addr %s176, 128
        %s178 = scalar_lea.vmem [#allocation5], %s177
        // Predicated region
        $region33: #{tpu_custom_call.1} parent=27 // pred_check
          %p179 = pneg %p79
        $region34: #{tpu_custom_call.1} parent=27 // pred_check_branch
          %181 = sbr.rel (%p179) target = $region36
        $region35: #{tpu_custom_call.1} parent=27 // pred_region
          %182 = dma.done %s175, 2048
        $region36: #{tpu_custom_call.1} parent=27 // pred_fallthru
          _
        %p183 = pneg %p53
        %p184 = pneg %p50
        %s185 = sand.u32 %s66, 1
        %s186 = scalar_lea.sflag [#allocation6], %s185
        %s187 = sand.u32 %s66, 1
        %s188 = smul.addr %s187, 128
        %s189 = scalar_lea.vmem [#allocation5], %s188
        %p190 = pneg %p79
        %p191 = pneg %p76
        %p192 = pneg %p107
        %p193 = pneg %p104
        %s194 = sand.u32 %s94, 1
        %s195 = scalar_lea.sflag [#allocation4], %s194
        %s196 = sand.u32 %s94, 1
        %s197 = smul.addr %s196, 8
        %s198 = scalar_lea.vmem [#allocation7], %s197
        %s199 = smul.u32 2, %s24
        %s200 = smul.u32 2, %s24
        %v201 = vld [vmem:[#allocation2] sm:$0xff]
        %v202 = vld [vmem:[#allocation2 + $0x8] sm:$0xff]
        %v203 = vld [vmem:[%s178] sm:$0xff]
        %v204 = vld [vmem:[%s178 + $0x8] sm:$0xff]
        %v205 = vld [vmem:[%s178 + $0x10] sm:$0xff]
        %v206 = vld [vmem:[%s178 + $0x18] sm:$0xff]
        %v207 = vld [vmem:[%s178 + $0x20] sm:$0xff]
        %v208 = vld [vmem:[%s178 + $0x28] sm:$0xff]
        %v209 = vld [vmem:[%s178 + $0x30] sm:$0xff]
        %v210 = vld [vmem:[%s178 + $0x38] sm:$0xff]
        %v211 = vld [vmem:[%s178 + $0x40] sm:$0xff]
        %v212 = vld [vmem:[%s178 + $0x48] sm:$0xff]
        %v213 = vld [vmem:[%s178 + $0x50] sm:$0xff]
        %v214 = vld [vmem:[%s178 + $0x58] sm:$0xff]
        %v215 = vld [vmem:[%s178 + $0x60] sm:$0xff]
        %v216 = vld [vmem:[%s178 + $0x68] sm:$0xff]
        %v217 = vld [vmem:[%s178 + $0x70] sm:$0xff]
        %v218 = vld [vmem:[%s178 + $0x78] sm:$0xff]
        %219 = vmatprep.subr.mxu0 0.0
        %220 = vmatpush1.msra.mxu0 %v203
        %221 = vmatprep.subr.mxu0 0.0
        %222 = vmatpush1.msra.mxu0 %v204
        %223 = vmatprep.subr.mxu0 0.0
        %224 = vmatpush1.msra.mxu0 %v205
        %225 = vmatprep.subr.mxu0 0.0
        %226 = vmatpush1.msra.mxu0 %v206
        %227 = vmatprep.subr.mxu0 0.0
        %228 = vmatpush1.msra.mxu0 %v207
        %229 = vmatprep.subr.mxu0 0.0
        %230 = vmatpush1.msra.mxu0 %v208
        %231 = vmatprep.subr.mxu0 0.0
        %232 = vmatpush1.msra.mxu0 %v209
        %233 = vmatprep.subr.mxu0 0.0
        %234 = vmatpush1.msra.mxu0 %v210
        %235 = vmatprep.subr.mxu0 0.0
        %236 = vmatpush1.msra.mxu0 %v211
        %237 = vmatprep.subr.mxu0 0.0
        %238 = vmatpush1.msra.mxu0 %v212
        %239 = vmatprep.subr.mxu0 0.0
        %240 = vmatpush1.msra.mxu0 %v213
        %241 = vmatprep.subr.mxu0 0.0
        %242 = vmatpush1.msra.mxu0 %v214
        %243 = vmatprep.subr.mxu0 0.0
        %244 = vmatpush1.msra.mxu0 %v215
        %245 = vmatprep.subr.mxu0 0.0
        %246 = vmatpush1.msra.mxu0 %v216
        %247 = vmatprep.subr.mxu0 0.0
        %248 = vmatpush1.msra.mxu0 %v217
        %249 = vmatprep.subr.mxu0 0.0
        %250 = vmatpush1.msra.mxu0 %v218
        %251 = vmatprep.subr.mxu0 0.0
        %252 = vmatpush1.msra.mxu0 0.0
        %253 = vmatprep.subr.mxu0 0.0
        %254 = vmatpush1.msra.mxu0 0.0
        %255 = vmatprep.subr.mxu0 0.0
        %256 = vmatpush1.msra.mxu0 0.0
        %257 = vmatprep.subr.mxu0 0.0
        %258 = vmatpush1.msra.mxu0 0.0
        %259 = vmatprep.subr.mxu0 0.0
        %260 = vmatpush1.msra.mxu0 0.0
        %261 = vmatprep.subr.mxu0 0.0
        %262 = vmatpush1.msra.mxu0 0.0
        %263 = vmatprep.subr.mxu0 0.0
        %264 = vmatpush1.msra.mxu0 0.0
        %265 = vmatprep.subr.mxu0 0.0
        %266 = vmatpush1.msra.mxu0 0.0
        %267 = vmatprep.subr.mxu0 0.0
        %268 = vmatpush1.msra.mxu0 0.0
        %269 = vmatprep.subr.mxu0 0.0
        %270 = vmatpush1.msra.mxu0 0.0
        %271 = vmatprep.subr.mxu0 0.0
        %272 = vmatpush1.msra.mxu0 0.0
        %273 = vmatprep.subr.mxu0 0.0
        %274 = vmatpush1.msra.mxu0 0.0
        %275 = vmatprep.subr.mxu0 0.0
        %276 = vmatpush1.msra.mxu0 0.0
        %277 = vmatprep.subr.mxu0 0.0
        %278 = vmatpush1.msra.mxu0 0.0
        %279 = vmatprep.subr.mxu0 0.0
        %280 = vmatpush1.msra.mxu0 0.0
        %281 = vmatprep.subr.mxu0 0.0
        %282 = vmatpush1.msra.mxu0 0.0
        %283 = vmatprep.mubr.f32.mxu0 0.0
        %284 = vmatmul.mubr.f32.gmra.mrb[0].mxu0 %v201
        %v285 = vpop.f32.mrb[0].mxu0
        %v286 = vadd.f32 0.0, %v285
        %v287 = vpop.f32.mrb[0].mxu0
        %288 = vmatprep.mubr.f32.mxu0 0.0
        %289 = vmatmul.mubr.f32.gmra.mrb[0].mxu0 %v202
        %v290 = vpop.f32.mrb[0].mxu0
        %v291 = vadd.f32 0.0, %v290
        %v292 = vpop.f32.mrb[0].mxu0
        %293 = vdwg.mxu0
        %v294 = vpack.c.bf16 %v291, %v286
        %v296 = vunpack.c.l.b16 %v294
        %v297 = vunpack.c.h.b16 %v294
        %v298 = vpack.c.b16 %v296, %v296
        %v299 = vpack.c.b16 %v297, %v297
        %302 = vst [vmem:[%s198] sm:$0xf] %v298
        %303 = vst [vmem:[%s198 + $0x4] sm:$0xf] %v299
        %s304 = sand.u32 %s94, 1
        %s305 = scalar_lea.sflag [#allocation4], %s304
        %s306 = sand.u32 %s94, 1
        %s307 = smul.addr %s306, 8
        %s308 = scalar_lea.vmem [#allocation7], %s307
        // Predicated region
        $region37: #{tpu_custom_call.1} parent=27 // pred_check
          %p309 = pneg %p104
        $region38: #{tpu_custom_call.1} parent=27 // pred_check_branch
          %311 = sbr.rel (%p309) target = $region40
        $region39: #{tpu_custom_call.1} parent=27 // pred_region
          %s312 = smul.u32 2, %s24
          %s314 = ssub.s32 128, 128
          %315 = vsyncadd %s305, %s314
          %s316 = smul.addr %s25, 2
          %s317 = sadd.s32 %s312, %s316
          %s318 = smul.addr %s317, 64
          %s319 = scalar_lea.hbm %s2, %s318
          %s320 = sshll.u32 %s308, 4
          %s321 = int_to_ptr.vmem [resolvable:$true] %s320
          %326 = dma.vmem_to_hbm [thread:$0]  %s321, 128, %s319, %s305, 64, 64, 4
        $region40: #{tpu_custom_call.1} parent=27 // pred_fallthru
          _
      $region28: #{tpu_custom_call.1} parent=5 // pred_fallthru
        _
      %p327 = scmp.le.s32.totalorder 2, %s15
      // Predicated region
      $region41: #{tpu_custom_call.1} parent=5 // pred_check
        %p328 = pneg %p327
      $region42: #{tpu_custom_call.1} parent=5 // pred_check_branch
        %330 = sbr.rel (%p328) target = $region44
      $region43: #{tpu_custom_call.1} parent=5 // pred_region
        %s331 = ssub.s32 %s15, 2
        // Predicated region
        $region45: #{tpu_custom_call.1} parent=43 // pred_check
          %p332 = pneg %p110
        $region46: #{tpu_custom_call.1} parent=43 // pred_check_branch
          %334 = sbr.rel (%p332) target = $region48
        $region47: #{tpu_custom_call.1} parent=43 // pred_region
          %s335 = sand.u32 %s95, 1
          %s336 = scalar_lea.sflag [#allocation4], %s335
          %s337 = sand.u32 %s95, 1
          %s338 = smul.addr %s337, 8
          %s339 = scalar_lea.vmem [#allocation7], %s338
          %340 = dma.done %s336, 128
        $region48: #{tpu_custom_call.1} parent=43 // pred_fallthru
          _
      $region44: #{tpu_custom_call.1} parent=5 // pred_fallthru
        _
    $region6: #{tpu_custom_call.1} parent=1 // loop_footer
      %s19 = sadd.s32 1, %s15
    $region7: #{tpu_custom_call.1} parent=1 // loop_footer_branch
      %14 = sbr.rel target = $region3
    $region8: #{tpu_custom_call.1} parent=1 // loop_exit
      _
    %341 = vsyncpa [#allocation3], 1
    %s342 = scalar_lea.sflag [#allocation3], 1
    %343 = vsyncpa %s342, 1
    %344 = vsyncpa [#allocation6], 1
    %s345 = scalar_lea.sflag [#allocation6], 1
    %346 = vsyncpa %s345, 1
    %347 = vsyncpa [#allocation4], 1
    %s348 = scalar_lea.sflag [#allocation4], 1
    %349 = vsyncpa %s348, 1

</llo_original>
